<compile_context>
chip_gen: v5e
topology: v5e:2x2
jax: 0.10.0
libtpu: 0.0.40
codegen_flags: <defaults>
</compile_context>

<pallas_src>
import math

import jax
import jax.numpy as jnp
from jax.experimental import pallas as pl
from jax.experimental.pallas import tpu as pltpu


def _round_up(x, m):
    return ((x + m - 1) // m) * m


def _qfunc_kernel(obs_ref, act_ref, w1o_ref, w1a_ref, b1_ref,
                  w2_ref, b2_ref, w3_ref, b3_ref, out_ref):
    # Layer 1: fused concat — x @ W1 == obs @ W1[:obs_dim] + act @ W1[obs_dim:]
    h = jnp.dot(obs_ref[...], w1o_ref[...], preferred_element_type=jnp.float32)
    h = h + jnp.dot(act_ref[...], w1a_ref[...], preferred_element_type=jnp.float32)
    h = jnp.maximum(h + b1_ref[...], 0.0)                       # f32 bias + ReLU
    # Layer 2: cast the LHS to the weight dtype so bf16 params take the bf16
    # MXU path (no-op for f32 params); accumulate in f32.
    h = jnp.dot(h.astype(w2_ref.dtype), w2_ref[...],
                preferred_element_type=jnp.float32)
    h = jnp.maximum(h + b2_ref[...], 0.0)
    # Output layer (out_features == 1): VPU multiply + XLU lane reduction, then
    # transpose the per-row scalars into a lane-dense (1, Bt) row so the
    # epilogue is unmasked full-vreg stores and one contiguous writeback DMA.
    q_col = jnp.sum(h * w3_ref[...], axis=-1, keepdims=True) + b3_ref[0, 0]
    out_ref[...] = jnp.transpose(q_col).astype(out_ref.dtype)   # (1, Bt)


def prepare_qfunc_params(params, obs_dim, matmul_dtype=None):
    """One-time parameter prep (hoisted off the per-forward critical path).

    Splits W1 at the obs/act boundary (fusing torch.cat into the kernel),
    reshapes the width-1 head for a lane reduction and its bias for SMEM, and
    optionally casts the matmul weights (W1, W2) to bf16. Biases, the head
    weight, and all elementwise math stay f32 (v5e has no bf16 VPU path).
    """
    w1, b1, w2, b2, w3, b3 = params
    w1o, w1a = w1[:obs_dim, :], w1[obs_dim:, :]
    if matmul_dtype is not None:
        w1o = w1o.astype(matmul_dtype)
        w1a = w1a.astype(matmul_dtype)
        w2 = w2.astype(matmul_dtype)
    return (w1o, w1a,
            jnp.reshape(b1, (1, -1)).astype(jnp.float32),
            w2,
            jnp.reshape(b2, (1, -1)).astype(jnp.float32),
            jnp.reshape(w3, (1, -1)).astype(jnp.float32),    # (H2,1) -> (1,H2)
            jnp.reshape(b3, (1, 1)).astype(jnp.float32))     # scalar for SMEM


def _batch_tile(B, block_b):
    """Pick the batch tile.

    Small batches: a single grid step with block == full (padded) array.
    Larger batches: 128-multiple tiles targeting ~4 (never fewer than 2) grid
    steps, so the pipeline stays busy and v7x can shard the parallel axis
    across both TensorCores, while keeping tiles big enough to amortize the
    ~0.35us per-step overhead.
    """
    B8 = _round_up(B, 8)
    if B8 < 256:
        return B8
    bt = max(256, _round_up(pl.cdiv(B8, 4), 128))     # aim for ~4 steps
    bt = min(bt, _round_up(pl.cdiv(B8, 2), 128))      # but always >= 2 steps
    bt = min(bt, max(128, _round_up(block_b, 128)), 4096)
    return bt


def mlp_q_function(obs, act, q_params, *, block_b=4096):
    """Pallas forward pass of MLPQFunction.

    obs: (B, obs_dim), act: (B, act_dim).
    q_params: output of prepare_qfunc_params().
    Returns q of shape (B,) — matches torch.squeeze(q, -1).
    """
    w1o, w1a, b1, w2, b2, w3_row, b3_s = q_params
    B, obs_dim = obs.shape
    act_dim = act.shape[-1]
    H1 = w1o.shape[1]
    H2 = w2.shape[1]
    mm_dtype = w1o.dtype

    Bt = _batch_tile(B, block_b)
    B_pad = _round_up(B, Bt)
    n_tiles = B_pad // Bt

    obs = obs.astype(mm_dtype)
    act = act.astype(mm_dtype)
    if B_pad != B:
        pad = B_pad - B
        obs = jnp.pad(obs, ((0, pad), (0, 0)))
        act = jnp.pad(act, ((0, pad), (0, 0)))

    # Explicit VMEM budget: resident weights + double-buffered obs/act/out
    # tiles + f32 activations, with headroom; clamped to v7x's 64 MiB physical
    # VMEM (v5e/v6e have 128 MiB, default scoped limit 16/32 MiB).
    mm_bytes = jnp.dtype(mm_dtype).itemsize
    weight_bytes = ((w1o.size + w1a.size + w2.size) * mm_bytes
                    + (b1.size + b2.size + w3_row.size) * 4)
    io_tile_bytes = Bt * (obs_dim + act_dim) * mm_bytes + Bt * 4
    act_bytes = Bt * (H1 + H2) * 4
    need = 2 * (weight_bytes + io_tile_bytes) + act_bytes
    vmem_limit = int(min(max(int(need * 1.25), 32 << 20), 64 << 20))

    tiled_rows = lambda i: (i, 0)     # batch-tiled operands
    resident = lambda i: (0, 0)       # weights/biases: same block every step
    # NOTE: for SAC-scale hidden sizes (>=1024) on v7x, add
    # pipeline_mode=pl.Buffered(1) to the resident weight specs to drop their
    # (pointless) second pipeline buffer and free VMEM for larger batch tiles.

    q2d = pl.pallas_call(
        _qfunc_kernel,
        out_shape=jax.ShapeDtypeStruct((n_tiles, Bt), jnp.float32),
        grid=(n_tiles,),
        in_specs=[
            pl.BlockSpec((Bt, obs_dim), tiled_rows),            # obs tile
            pl.BlockSpec((Bt, act_dim), tiled_rows),            # act tile
            pl.BlockSpec((obs_dim, H1), resident),              # W1[:obs_dim]
            pl.BlockSpec((act_dim, H1), resident),              # W1[obs_dim:]
            pl.BlockSpec((1, H1), resident),                    # b1
            pl.BlockSpec((H1, H2), resident),                   # W2
            pl.BlockSpec((1, H2), resident),                    # b2
            pl.BlockSpec((1, H2), resident),                    # w3 as a row
            pl.BlockSpec(memory_space=pltpu.MemorySpace.SMEM),  # b3 scalar
        ],
        out_specs=pl.BlockSpec((1, Bt), lambda i: (i, 0)),      # lane-dense rows
        compiler_params=pltpu.CompilerParams(
            dimension_semantics=("parallel",),
            vmem_limit_bytes=vmem_limit),
    )(obs, act, w1o, w1a, b1, w2, b2, w3_row, b3_s)

    return jnp.reshape(q2d, (-1,))[:B]


def init_params(key, obs_dim, act_dim, hidden_sizes):
    """Deterministic init mimicking torch.nn.Linear default U(-1/sqrt(fan_in), 1/sqrt(fan_in))."""
    sizes = [obs_dim + act_dim] + list(hidden_sizes) + [1]
    params = []
    for j in range(len(sizes) - 1):
        fan_in, fan_out = sizes[j], sizes[j + 1]
        key, kw, kb = jax.random.split(key, 3)
        bound = 1.0 / math.sqrt(fan_in)
        w = jax.random.uniform(kw, (fan_in, fan_out), jnp.float32, -bound, bound)
        b = jax.random.uniform(kb, (1, fan_out), jnp.float32, -bound, bound)
        params += [w, b]
    return tuple(params)


def _reference_q(obs, act, params):
    """Pure-JAX reference with the explicit concat (mirrors the torch module)."""
    w1, b1, w2, b2, w3, b3 = params
    x = jnp.concatenate([obs, act], axis=-1)
    h = jnp.maximum(x @ w1 + b1, 0.0)
    h = jnp.maximum(h @ w2 + b2, 0.0)
    return jnp.squeeze(h @ w3 + b3, -1)


if __name__ == "__main__":
    key = jax.random.PRNGKey(0)
    obs_dim, act_dim = 16, 8
    hidden_sizes = (32, 32)     # SAC default activation = ReLU

    key, k_params = jax.random.split(key)
    params = init_params(k_params, obs_dim, act_dim, hidden_sizes)
    q_params = prepare_qfunc_params(params, obs_dim)

    # 1) small batch (single grid step, full-array blocks)
    key, k_o, k_a = jax.random.split(key, 3)
    obs = jax.random.normal(k_o, (8, obs_dim), jnp.float32)
    act = jax.random.normal(k_a, (8, act_dim), jnp.float32)
    q = mlp_q_function(obs, act, q_params)
    jax.block_until_ready(q)
    assert q.shape == (8,), q.shape
    assert jnp.allclose(q, _reference_q(obs, act, params), atol=1e-5, rtol=1e-5)

    # 2) ragged batch (padded tail rows, sliced off after the call)
    key, k_o, k_a = jax.random.split(key, 3)
    obs2 = jax.random.normal(k_o, (21, obs_dim), jnp.float32)
    act2 = jax.random.normal(k_a, (21, act_dim), jnp.float32)
    q2 = mlp_q_function(obs2, act2, q_params)
    jax.block_until_ready(q2)
    assert q2.shape == (21,), q2.shape
    assert jnp.allclose(q2, _reference_q(obs2, act2, params), atol=1e-5, rtol=1e-5)

    # 3) multi-tile batch: exercises the lane-dense (1, Bt) output blocks and
    #    the >=2-step parallel grid (v7x dual-core sharding path).
    key, k_o, k_a = jax.random.split(key, 3)
    obs3 = jax.random.normal(k_o, (300, obs_dim), jnp.float32)
    act3 = jax.random.normal(k_a, (300, act_dim), jnp.float32)
    q3 = mlp_q_function(obs3, act3, q_params)
    jax.block_until_ready(q3)
    assert q3.shape == (300,), q3.shape
    assert jnp.allclose(q3, _reference_q(obs3, act3, params), atol=1e-5, rtol=1e-5)

    # 4) bf16 matmul operands (v6e/v7x recommendation), f32 accumulation and
    #    f32 elementwise; compared against the f32 reference with a loose tol.
    q_params_bf16 = prepare_qfunc_params(params, obs_dim, matmul_dtype=jnp.bfloat16)
    q4 = mlp_q_function(obs3, act3, q_params_bf16)
    jax.block_until_ready(q4)
    assert q4.shape == (300,), q4.shape
    assert jnp.allclose(q4, _reference_q(obs3, act3, params), atol=1e-1, rtol=1e-1)

    print("KERNEL_OK")
</pallas_src>

<mosaic_0001>
module attributes {stable_mosaic.version = 11 : i64} {
  func.func @_qfunc_kernel(%arg0: i32, %arg1: memref<8x16xf32, #tpu.memory_space<vmem>>, %arg2: memref<8x8xf32, #tpu.memory_space<vmem>>, %arg3: memref<16x32xf32, #tpu.memory_space<vmem>>, %arg4: memref<8x32xf32, #tpu.memory_space<vmem>>, %arg5: memref<1x32xf32, #tpu.memory_space<vmem>>, %arg6: memref<32x32xf32, #tpu.memory_space<vmem>>, %arg7: memref<1x32xf32, #tpu.memory_space<vmem>>, %arg8: memref<1x32xf32, #tpu.memory_space<vmem>>, %arg9: memref<1x1xf32, #tpu.memory_space<smem>>, %arg10: memref<1x8xf32, #tpu.memory_space<vmem>>) attributes {dimension_semantics = [#tpu.dimension_semantics<parallel>], iteration_bounds = array<i64: 1>, scalar_prefetch = 0 : i64, scratch_operands = 0 : i64, tpu.core_type = #tpu.core_type<tc>, window_params = [{transform_indices = @transform_0, window_bounds = array<i64: 8, 16>}, {transform_indices = @transform_1, window_bounds = array<i64: 8, 8>}, {pipeline_mode = #tpu.pipeline_mode<synchronous>, transform_indices = @transform_2, window_bounds = array<i64: 16, 32>}, {pipeline_mode = #tpu.pipeline_mode<synchronous>, transform_indices = @transform_3, window_bounds = array<i64: 8, 32>}, {pipeline_mode = #tpu.pipeline_mode<synchronous>, transform_indices = @transform_4, window_bounds = array<i64: 1, 32>}, {pipeline_mode = #tpu.pipeline_mode<synchronous>, transform_indices = @transform_5, window_bounds = array<i64: 32, 32>}, {pipeline_mode = #tpu.pipeline_mode<synchronous>, transform_indices = @transform_6, window_bounds = array<i64: 1, 32>}, {pipeline_mode = #tpu.pipeline_mode<synchronous>, transform_indices = @transform_7, window_bounds = array<i64: 1, 32>}, {transform_indices = @transform_8, window_bounds = array<i64: 1, 1>}, {transform_indices = @transform_9, window_bounds = array<i64: 1, 8>}]} {
    %c0 = arith.constant 0 : index
    %c0_0 = arith.constant 0 : index
    %0 = vector.load %arg1[%c0, %c0_0] : memref<8x16xf32, #tpu.memory_space<vmem>>, vector<8x16xf32>
    %c0_1 = arith.constant 0 : index
    %c0_2 = arith.constant 0 : index
    %1 = vector.load %arg3[%c0_1, %c0_2] : memref<16x32xf32, #tpu.memory_space<vmem>>, vector<16x32xf32>
    %cst = arith.constant dense<0.000000e+00> : vector<8x32xf32>
    %2 = tpu.matmul %0, %1, %cst {dimension_numbers = #tpu.dot_dimension_numbers<[1], [0], [0], [1], [0, 0, 1, 1], [], []>} : vector<8x16xf32>, vector<16x32xf32>, vector<8x32xf32> -> vector<8x32xf32>
    %c0_3 = arith.constant 0 : index
    %c0_4 = arith.constant 0 : index
    %3 = vector.load %arg2[%c0_3, %c0_4] : memref<8x8xf32, #tpu.memory_space<vmem>>, vector<8x8xf32>
    %c0_5 = arith.constant 0 : index
    %c0_6 = arith.constant 0 : index
    %4 = vector.load %arg4[%c0_5, %c0_6] : memref<8x32xf32, #tpu.memory_space<vmem>>, vector<8x32xf32>
    %cst_7 = arith.constant dense<0.000000e+00> : vector<8x32xf32>
    %5 = tpu.matmul %3, %4, %cst_7 {dimension_numbers = #tpu.dot_dimension_numbers<[1], [0], [0], [1], [0, 0, 1, 1], [], []>} : vector<8x8xf32>, vector<8x32xf32>, vector<8x32xf32> -> vector<8x32xf32>
    %6 = arith.addf %2, %5 : vector<8x32xf32>
    %c0_8 = arith.constant 0 : index
    %c0_9 = arith.constant 0 : index
    %7 = vector.load %arg5[%c0_8, %c0_9] : memref<1x32xf32, #tpu.memory_space<vmem>>, vector<1x32xf32>
    %8 = vector.broadcast %7 : vector<1x32xf32> to vector<8x32xf32>
    %9 = arith.addf %6, %8 : vector<8x32xf32>
    %cst_10 = arith.constant 0.000000e+00 : f32
    %10 = vector.broadcast %cst_10 : f32 to vector<8x32xf32>
    %11 = arith.maximumf %9, %10 : vector<8x32xf32>
    %c0_11 = arith.constant 0 : index
    %c0_12 = arith.constant 0 : index
    %12 = vector.load %arg6[%c0_11, %c0_12] : memref<32x32xf32, #tpu.memory_space<vmem>>, vector<32x32xf32>
    %cst_13 = arith.constant dense<0.000000e+00> : vector<8x32xf32>
    %13 = tpu.matmul %11, %12, %cst_13 {dimension_numbers = #tpu.dot_dimension_numbers<[1], [0], [0], [1], [0, 0, 1, 1], [], []>} : vector<8x32xf32>, vector<32x32xf32>, vector<8x32xf32> -> vector<8x32xf32>
    %c0_14 = arith.constant 0 : index
    %c0_15 = arith.constant 0 : index
    %14 = vector.load %arg7[%c0_14, %c0_15] : memref<1x32xf32, #tpu.memory_space<vmem>>, vector<1x32xf32>
    %15 = vector.broadcast %14 : vector<1x32xf32> to vector<8x32xf32>
    %16 = arith.addf %13, %15 : vector<8x32xf32>
    %cst_16 = arith.constant 0.000000e+00 : f32
    %17 = vector.broadcast %cst_16 : f32 to vector<8x32xf32>
    %18 = arith.maximumf %16, %17 : vector<8x32xf32>
    %c0_17 = arith.constant 0 : index
    %c0_18 = arith.constant 0 : index
    %19 = vector.load %arg8[%c0_17, %c0_18] : memref<1x32xf32, #tpu.memory_space<vmem>>, vector<1x32xf32>
    %20 = vector.broadcast %19 : vector<1x32xf32> to vector<8x32xf32>
    %21 = arith.mulf %18, %20 : vector<8x32xf32>
    %cst_19 = arith.constant dense<0.000000e+00> : vector<8xf32>
    %22 = vector.multi_reduction <add>, %21, %cst_19 [1] : vector<8x32xf32> to vector<8xf32>
    %23 = vector.shape_cast %22 : vector<8xf32> to vector<8x1xf32>
    %c0_20 = arith.constant 0 : index
    %c0_21 = arith.constant 0 : index
    %24 = memref.load %arg9[%c0_20, %c0_21] : memref<1x1xf32, #tpu.memory_space<smem>>
    %25 = vector.broadcast %24 : f32 to vector<8x1xf32>
    %26 = arith.addf %23, %25 : vector<8x1xf32>
    %27 = tpu.transpose %26, [1, 0] : vector<8x1xf32> -> vector<1x8xf32>
    %c0_22 = arith.constant 0 : index
    %c0_23 = arith.constant 0 : index
    %28 = vector.load %arg10[%c0_22, %c0_23] : memref<1x8xf32, #tpu.memory_space<vmem>>, vector<1x8xf32>
    tpu.vector_store %arg10[%c0_22, %c0_23], %27 {strides = array<i32>} : memref<1x8xf32, #tpu.memory_space<vmem>>, vector<1x8xf32>,
    return
  }
  func.func @transform_0(%arg0: i32) -> (i32, i32) {
    %c0_i32 = arith.constant 0 : i32
    %c0_i32_0 = arith.constant 0 : i32
    return %arg0, %c0_i32 : i32, i32
  }
  func.func @transform_1(%arg0: i32) -> (i32, i32) {
    %c0_i32 = arith.constant 0 : i32
    %c0_i32_0 = arith.constant 0 : i32
    return %arg0, %c0_i32 : i32, i32
  }
  func.func @transform_2(%arg0: i32) -> (i32, i32) {
    %c0_i32 = arith.constant 0 : i32
    %c0_i32_0 = arith.constant 0 : i32
    %c0_i32_1 = arith.constant 0 : i32
    return %c0_i32, %c0_i32_0 : i32, i32
  }
  func.func @transform_3(%arg0: i32) -> (i32, i32) {
    %c0_i32 = arith.constant 0 : i32
    %c0_i32_0 = arith.constant 0 : i32
    %c0_i32_1 = arith.constant 0 : i32
    return %c0_i32, %c0_i32_0 : i32, i32
  }
  func.func @transform_4(%arg0: i32) -> (i32, i32) {
    %c0_i32 = arith.constant 0 : i32
    %c0_i32_0 = arith.constant 0 : i32
    %c0_i32_1 = arith.constant 0 : i32
    return %c0_i32, %c0_i32_0 : i32, i32
  }
  func.func @transform_5(%arg0: i32) -> (i32, i32) {
    %c0_i32 = arith.constant 0 : i32
    %c0_i32_0 = arith.constant 0 : i32
    %c0_i32_1 = arith.constant 0 : i32
    return %c0_i32, %c0_i32_0 : i32, i32
  }
  func.func @transform_6(%arg0: i32) -> (i32, i32) {
    %c0_i32 = arith.constant 0 : i32
    %c0_i32_0 = arith.constant 0 : i32
    %c0_i32_1 = arith.constant 0 : i32
    return %c0_i32, %c0_i32_0 : i32, i32
  }
  func.func @transform_7(%arg0: i32) -> (i32, i32) {
    %c0_i32 = arith.constant 0 : i32
    %c0_i32_0 = arith.constant 0 : i32
    %c0_i32_1 = arith.constant 0 : i32
    return %c0_i32, %c0_i32_0 : i32, i32
  }
  func.func @transform_8(%arg0: i32) -> (i32, i32) {
    %c0_i32 = arith.constant 0 : i32
    %c0_i32_0 = arith.constant 0 : i32
    %c0_i32_1 = arith.constant 0 : i32
    return %c0_i32, %c0_i32_0 : i32, i32
  }
  func.func @transform_9(%arg0: i32) -> (i32, i32) {
    %c0_i32 = arith.constant 0 : i32
    %c0_i32_0 = arith.constant 0 : i32
    return %arg0, %c0_i32 : i32, i32
  }
}

</mosaic_0001>

<llo_original>
// kernel: tpu_custom_call.1
$region0: #{tpu_custom_call.1}
  #allocation0 [shape = 'u32[]', space=smem, size = 0x4, offset = 0x4, fixed_abs, tag = 'smem constant byte address 0x4 - core index']
  #allocation1 [shape = 'u32[72,128]{1,0:T(1,128)}', space=vmem, size = 0x9000, scoped, tag = 'internal scratch']
  #allocation2 [shape = 'f32[1,1]{1,0:T(1,128)S(6)}', space=smem, size = 0x200, scoped, tag = 'scoped memory for tpu_custom_call.1']
  %s0 = inlined_call_operand.hbm [shape: f32[8,16], index: 0, kind: input, shape index: {}]
  %s1 = inlined_call_operand.hbm [shape: f32[8,8], index: 1, kind: input, shape index: {}]
  %s2 = inlined_call_operand.hbm [shape: f32[16,32], index: 2, kind: input, shape index: {}]
  %s3 = inlined_call_operand.hbm [shape: f32[8,32], index: 3, kind: input, shape index: {}]
  %s4 = inlined_call_operand.vmem [shape: f32[1,32], index: 4, kind: input, shape index: {}]
  %s5 = inlined_call_operand.hbm [shape: f32[32,32], index: 5, kind: input, shape index: {}]
  %s6 = inlined_call_operand.vmem [shape: f32[1,32], index: 6, kind: input, shape index: {}]
  %s7 = inlined_call_operand.vmem [shape: f32[1,32], index: 7, kind: input, shape index: {}]
  %s8 = inlined_call_operand.<no memory space> [shape: f32[1,1], index: 8, kind: input, shape index: {}]
  %s9 = inlined_call_operand.hbm [shape: f32[1,8], index: 9, kind: output, shape index: {}]
  %s10 = sld [smem:[#allocation0]]
  $region66: #{tpu_custom_call.1} parent=0
    _
  %s12 = ssub.s32 1, %s10
  %s13 = scalar_select 0, %s12, %s10
  %14 = sst [smem:[#allocation2]] %s8
  $region1: #{tpu_custom_call.1} parent=0
    #allocation3 [shape = 'u8[4096]{0}', space=vmem, size = 0x1000, scoped, tag = 'input window, operand 0, single buffered']
    #allocation4 [shape = 's32[1]{0}', space=sflag, size = 0x4, scoped, tag = 'scoped memory for tpu_custom_call.1']
    #allocation5 [shape = 's32[1]{0}', space=sflag, size = 0x4, scoped, tag = 'scoped memory for tpu_custom_call.1']
    #allocation6 [shape = 'u8[4096]{0}', space=vmem, size = 0x1000, scoped, tag = 'input window, operand 1, single buffered']
    #allocation7 [shape = 's32[1]{0}', space=sflag, size = 0x4, scoped, tag = 'scoped memory for tpu_custom_call.1']
    #allocation8 [shape = 'u8[8192]{0}', space=vmem, size = 0x2000, scoped, tag = 'input window, operand 2, single buffered']
    #allocation9 [shape = 'u8[4096]{0}', space=vmem, size = 0x1000, scoped, tag = 'input window, operand 3, single buffered']
    #allocation10 [shape = 's32[1]{0}', space=sflag, size = 0x4, scoped, tag = 'scoped memory for tpu_custom_call.1']
    #allocation11 [shape = 'u8[16384]{0}', space=vmem, size = 0x4000, scoped, tag = 'input window, operand 5, single buffered']
    #allocation12 [shape = 'u8[512]{0}', space=vmem, size = 0x400, scoped, tag = 'output window, operand 0, single buffered']
    %15 = vsyncpa [#allocation4], 0
    %16 = vsyncpa [#allocation7], 0
    %17 = vsyncpa [#allocation10], 0
    %18 = vsyncpa [#allocation5], 0
    // Predicated region
    $region2: #{tpu_custom_call.1} parent=1 // pred_check
      _
    $region3: #{tpu_custom_call.1} parent=1 // pred_check_branch
      %20 = sbr.rel (0) target = $region5
    $region4: #{tpu_custom_call.1} parent=1 // pred_region
      %22 = vsyncadd [#allocation4], 0
      %s24 = sshll.u32 %s0, 4
      %s25 = int_to_ptr.hbm [resolvable:$true] %s24
      %s26 = sshll.u32 [#allocation3], 4
      %s27 = int_to_ptr.vmem [resolvable:$true] %s26
      %29 = dma.hbm_to_vmem [thread:$0]  %s25, 128, %s27, [#allocation4]
    $region5: #{tpu_custom_call.1} parent=1 // pred_fallthru
      _
    // Predicated region
    $region6: #{tpu_custom_call.1} parent=1 // pred_check
      _
    $region7: #{tpu_custom_call.1} parent=1 // pred_check_branch
      %31 = sbr.rel (0) target = $region9
    $region8: #{tpu_custom_call.1} parent=1 // pred_region
      %33 = vsyncadd [#allocation7], 0
      %s35 = sshll.u32 %s1, 4
      %s36 = int_to_ptr.hbm [resolvable:$true] %s35
      %s37 = sshll.u32 [#allocation6], 4
      %s38 = int_to_ptr.vmem [resolvable:$true] %s37
      %40 = dma.hbm_to_vmem [thread:$0]  %s36, 128, %s38, [#allocation7]
    $region9: #{tpu_custom_call.1} parent=1 // pred_fallthru
      _
    // Predicated region
    $region10: #{tpu_custom_call.1} parent=1 // pred_check
      _
    $region11: #{tpu_custom_call.1} parent=1 // pred_check_branch
      %42 = sbr.rel (0) target = $region13
    $region12: #{tpu_custom_call.1} parent=1 // pred_region
      %44 = vsyncadd [#allocation7], 0
      %s45 = sshll.u32 %s2, 4
      %s46 = int_to_ptr.hbm [resolvable:$true] %s45
      %s47 = sshll.u32 [#allocation8], 4
      %s48 = int_to_ptr.vmem [resolvable:$true] %s47
      %53 = dma.hbm_to_vmem [thread:$0]  %s46, 256, %s48, [#allocation7], 128, 128, 8
    $region13: #{tpu_custom_call.1} parent=1 // pred_fallthru
      _
    // Predicated region
    $region14: #{tpu_custom_call.1} parent=1 // pred_check
      _
    $region15: #{tpu_custom_call.1} parent=1 // pred_check_branch
      %55 = sbr.rel (0) target = $region17
    $region16: #{tpu_custom_call.1} parent=1 // pred_region
      %57 = vsyncadd [#allocation10], 0
      %s59 = sshll.u32 %s3, 4
      %s60 = int_to_ptr.hbm [resolvable:$true] %s59
      %s61 = sshll.u32 [#allocation9], 4
      %s62 = int_to_ptr.vmem [resolvable:$true] %s61
      %64 = dma.hbm_to_vmem [thread:$0]  %s60, 128, %s62, [#allocation10]
    $region17: #{tpu_custom_call.1} parent=1 // pred_fallthru
      _
    // Predicated region
    $region18: #{tpu_custom_call.1} parent=1 // pred_check
      _
    $region19: #{tpu_custom_call.1} parent=1 // pred_check_branch
      %66 = sbr.rel (0) target = $region21
    $region20: #{tpu_custom_call.1} parent=1 // pred_region
      _
    $region21: #{tpu_custom_call.1} parent=1 // pred_fallthru
      _
    // Predicated region
    $region22: #{tpu_custom_call.1} parent=1 // pred_check
      _
    $region23: #{tpu_custom_call.1} parent=1 // pred_check_branch
      %68 = sbr.rel (0) target = $region25
    $region24: #{tpu_custom_call.1} parent=1 // pred_region
      %70 = vsyncadd [#allocation10], 0
      %s71 = sshll.u32 %s5, 4
      %s72 = int_to_ptr.hbm [resolvable:$true] %s71
      %s73 = sshll.u32 [#allocation11], 4
      %s74 = int_to_ptr.vmem [resolvable:$true] %s73
      %79 = dma.hbm_to_vmem [thread:$0]  %s72, 512, %s74, [#allocation10], 128, 128, 8
    $region25: #{tpu_custom_call.1} parent=1 // pred_fallthru
      _
    // Predicated region
    $region26: #{tpu_custom_call.1} parent=1 // pred_check
      _
    $region27: #{tpu_custom_call.1} parent=1 // pred_check_branch
      %81 = sbr.rel (0) target = $region29
    $region28: #{tpu_custom_call.1} parent=1 // pred_region
      _
    $region29: #{tpu_custom_call.1} parent=1 // pred_fallthru
      _
    // Predicated region
    $region30: #{tpu_custom_call.1} parent=1 // pred_check
      _
    $region31: #{tpu_custom_call.1} parent=1 // pred_check_branch
      %83 = sbr.rel (0) target = $region33
    $region32: #{tpu_custom_call.1} parent=1 // pred_region
      _
    $region33: #{tpu_custom_call.1} parent=1 // pred_fallthru
      _
    // Predicated region
    $region34: #{tpu_custom_call.1} parent=1 // pred_check
      _
    $region35: #{tpu_custom_call.1} parent=1 // pred_check_branch
      %85 = sbr.rel (0) target = $region37
    $region36: #{tpu_custom_call.1} parent=1 // pred_region
      _
    $region37: #{tpu_custom_call.1} parent=1 // pred_fallthru
      _
    // Predicated region
    $region38: #{tpu_custom_call.1} parent=1 // pred_check
      _
    $region39: #{tpu_custom_call.1} parent=1 // pred_check_branch
      %87 = sbr.rel (0) target = $region41
    $region40: #{tpu_custom_call.1} parent=1 // pred_region
      %89 = dma.done [#allocation4], 128
    $region41: #{tpu_custom_call.1} parent=1 // pred_fallthru
      _
    // Predicated region
    $region42: #{tpu_custom_call.1} parent=1 // pred_check
      _
    $region43: #{tpu_custom_call.1} parent=1 // pred_check_branch
      %91 = sbr.rel (0) target = $region45
    $region44: #{tpu_custom_call.1} parent=1 // pred_region
      %93 = dma.done [#allocation7], 128
    $region45: #{tpu_custom_call.1} parent=1 // pred_fallthru
      _
    // Predicated region
    $region46: #{tpu_custom_call.1} parent=1 // pred_check
      _
    $region47: #{tpu_custom_call.1} parent=1 // pred_check_branch
      %95 = sbr.rel (0) target = $region49
    $region48: #{tpu_custom_call.1} parent=1 // pred_region
      %97 = dma.done [#allocation7], 256
    $region49: #{tpu_custom_call.1} parent=1 // pred_fallthru
      _
    // Predicated region
    $region50: #{tpu_custom_call.1} parent=1 // pred_check
      _
    $region51: #{tpu_custom_call.1} parent=1 // pred_check_branch
      %99 = sbr.rel (0) target = $region53
    $region52: #{tpu_custom_call.1} parent=1 // pred_region
      %101 = dma.done [#allocation10], 128
    $region53: #{tpu_custom_call.1} parent=1 // pred_fallthru
      _
    // Predicated region
    $region54: #{tpu_custom_call.1} parent=1 // pred_check
      _
    $region55: #{tpu_custom_call.1} parent=1 // pred_check_branch
      %103 = sbr.rel (0) target = $region57
    $region56: #{tpu_custom_call.1} parent=1 // pred_region
      %105 = dma.done [#allocation10], 512
    $region57: #{tpu_custom_call.1} parent=1 // pred_fallthru
      _
    %v106 = vld [vmem:[#allocation3] sm:$0xff]
    %v107 = vld [vmem:[#allocation8] sm:$0xff]
    %v108 = vld [vmem:[#allocation8 + $0x8] sm:$0xff]
    %v109 = vld [vmem:[#allocation6] sm:$0xff]
    %v110 = vld [vmem:[#allocation9] sm:$0xff]
    %vm111 = vcmask 64512
    %v113 = vsel %vm111, %v109, 0
    %115 = vmatpush.msra.mxu0 0.0
    %116 = vmatpush.msra.mxu0 0.0
    %117 = vmatpush.msra.mxu0 0.0
    %118 = vmatpush.msra.mxu0 0.0
    %119 = vmatpush.msra.mxu0 0.0
    %120 = vmatpush.msra.mxu0 0.0
    %121 = vmatpush.msra.mxu0 0.0
    %122 = vmatpush.msra.mxu0 0.0
    %123 = vmatpush.msra.mxu0 0.0
    %124 = vmatpush.msra.mxu0 0.0
    %125 = vmatpush.msra.mxu0 0.0
    %126 = vmatpush.msra.mxu0 0.0
    %127 = vmatpush.msra.mxu0 0.0
    %128 = vmatpush.msra.mxu0 0.0
    %129 = vmatpush.msra.mxu0 0.0
    %130 = vmatpush.msra.mxu0 %v110
    %131 = vmatmul.f32.gmra.mxu0 %v113
    %v132 = vpop.f32.mrf.mxu0
    %v133 = vadd.f32 0.0, %v132
    %134 = vdwg.mxu0
    %vm135 = vcmask 130048
    %v137 = vsel %vm135, %v106, 0
    %139 = vmatpush.msra.mxu0 0.0
    %140 = vmatpush.msra.mxu0 0.0
    %141 = vmatpush.msra.mxu0 0.0
    %142 = vmatpush.msra.mxu0 0.0
    %143 = vmatpush.msra.mxu0 0.0
    %144 = vmatpush.msra.mxu0 0.0
    %145 = vmatpush.msra.mxu0 0.0
    %146 = vmatpush.msra.mxu0 0.0
    %147 = vmatpush.msra.mxu0 0.0
    %148 = vmatpush.msra.mxu0 0.0
    %149 = vmatpush.msra.mxu0 0.0
    %150 = vmatpush.msra.mxu0 0.0
    %151 = vmatpush.msra.mxu0 0.0
    %152 = vmatpush.msra.mxu0 0.0
    %153 = vmatpush.msra.mxu0 %v108
    %154 = vmatpush.msra.mxu0 %v107
    %155 = vmatmul.f32.gmra.mxu0 %v137
    %v156 = vpop.f32.mrf.mxu0
    %v157 = vadd.f32 %v133, %v156
    %158 = vdwg.mxu0
    %v159 = vld [vmem:[%s4] sm:$0x1]
    %v161 = vperm.slane %v159, 0
    %v163 = vadd.f32 %v157, %v161
    %v164 = vmax.f32 %v163, 0.0
    %v165 = vld [vmem:[#allocation11] sm:$0xff]
    %v166 = vld [vmem:[#allocation11 + $0x8] sm:$0xff]
    %v167 = vld [vmem:[#allocation11 + $0x10] sm:$0xff]
    %v168 = vld [vmem:[#allocation11 + $0x18] sm:$0xff]
    %v169 = vld [vmem:[%s6] sm:$0x1]
    %v171 = vperm.slane %v169, 0
    %vm173 = vcmask 261120
    %v175 = vsel %vm173, %v164, 0
    %177 = vmatpush.msra.mxu0 0.0
    %178 = vmatpush.msra.mxu0 0.0
    %179 = vmatpush.msra.mxu0 0.0
    %180 = vmatpush.msra.mxu0 0.0
    %181 = vmatpush.msra.mxu0 0.0
    %182 = vmatpush.msra.mxu0 0.0
    %183 = vmatpush.msra.mxu0 0.0
    %184 = vmatpush.msra.mxu0 0.0
    %185 = vmatpush.msra.mxu0 0.0
    %186 = vmatpush.msra.mxu0 0.0
    %187 = vmatpush.msra.mxu0 0.0
    %188 = vmatpush.msra.mxu0 0.0
    %189 = vmatpush.msra.mxu0 %v168
    %190 = vmatpush.msra.mxu0 %v167
    %191 = vmatpush.msra.mxu0 %v166
    %192 = vmatpush.msra.mxu0 %v165
    %193 = vmatmul.f32.gmra.mxu0 %v175
    %v194 = vpop.f32.mrf.mxu0
    %v195 = vadd.f32 %v171, %v194
    %196 = vdwg.mxu0
    %v197 = vmax.f32 %v195, 0.0
    %v198 = vld [vmem:[%s7] sm:$0x1]
    %v200 = vperm.slane %v198, 0
    %v202 = vmul.f32 %v197, %v200
    %v203 = vsel %vm173, %v202, 0.0
    %204 = vadd.xlane.f32.xlu0 %v203
    %v205 = vpop.xlane.xlu0 %204
    %s206 = sld [smem:[#allocation2]]
    %v207 = vstv %s206
    %v208 = vadd.f32 %v205, %v207
    %209 = vxpose.xlu0.b32.start [1/16] %v208, 128
    %210 = vxpose.xlu0.b32.cont [2/16] 0.0, 128
    %211 = vxpose.xlu0.b32.cont [3/16] 0.0, 128
    %212 = vxpose.xlu0.b32.cont [4/16] 0.0, 128
    %213 = vxpose.xlu0.b32.cont [5/16] 0.0, 128
    %214 = vxpose.xlu0.b32.cont [6/16] 0.0, 128
    %215 = vxpose.xlu0.b32.cont [7/16] 0.0, 128
    %216 = vxpose.xlu0.b32.cont [8/16] 0.0, 128
    %217 = vxpose.xlu0.b32.cont [9/16] 0.0, 128
    %218 = vxpose.xlu0.b32.cont [10/16] 0.0, 128
    %219 = vxpose.xlu0.b32.cont [11/16] 0.0, 128
    %220 = vxpose.xlu0.b32.cont [12/16] 0.0, 128
    %221 = vxpose.xlu0.b32.cont [13/16] 0.0, 128
    %222 = vxpose.xlu0.b32.cont [14/16] 0.0, 128
    %223 = vxpose.xlu0.b32.cont [15/16] 0.0, 128
    %224 = vxpose.xlu0.b32.end [16/16] 0.0, 128
    %v225 = vpop.trf.xlu0
    %v226 = vpop.trf.xlu0
    %v227 = vpop.trf.xlu0
    %v228 = vpop.trf.xlu0
    %v229 = vpop.trf.xlu0
    %v230 = vpop.trf.xlu0
    %v231 = vpop.trf.xlu0
    %v232 = vpop.trf.xlu0
    %v233 = vpop.trf.xlu0
    %v234 = vpop.trf.xlu0
    %v235 = vpop.trf.xlu0
    %v236 = vpop.trf.xlu0
    %v237 = vpop.trf.xlu0
    %v238 = vpop.trf.xlu0
    %v239 = vpop.trf.xlu0
    %v240 = vpop.trf.xlu0
    %vm241 = vcmask 57344
    %242 = vst.msk [vmem:[#allocation12] sm:$0x1] %vm241, %v225
    // Predicated region
    $region58: #{tpu_custom_call.1} parent=1 // pred_check
      _
    $region59: #{tpu_custom_call.1} parent=1 // pred_check_branch
      %244 = sbr.rel (0) target = $region61
    $region60: #{tpu_custom_call.1} parent=1 // pred_region
      %246 = vsyncadd [#allocation5], 0
      %s248 = sshll.u32 [#allocation12], 4
      %s249 = int_to_ptr.vmem [resolvable:$true] %s248
      %s250 = sshll.u32 %s9, 4
      %s251 = int_to_ptr.hbm [resolvable:$true] %s250
      %253 = dma.vmem_to_hbm [thread:$0]  %s249, 16, %s251, [#allocation5]
    $region61: #{tpu_custom_call.1} parent=1 // pred_fallthru
      _
    // Predicated region
    $region62: #{tpu_custom_call.1} parent=1 // pred_check
      _
    $region63: #{tpu_custom_call.1} parent=1 // pred_check_branch
      %255 = sbr.rel (0) target = $region65
    $region64: #{tpu_custom_call.1} parent=1 // pred_region
      %257 = dma.done [#allocation5], 16
    $region65: #{tpu_custom_call.1} parent=1 // pred_fallthru
      _
    %258 = vsyncpa [#allocation4], 1
    %259 = vsyncpa [#allocation7], 1
    %260 = vsyncpa [#allocation10], 1
    %261 = vsyncpa [#allocation5], 1

</llo_original>
